<compile_context>
chip_gen: v6e
topology: v6e:2x2x1
jax: 0.10.0
libtpu: 0.0.40
codegen_flags: <defaults>
</compile_context>

<pallas_src>
import functools

import jax
import jax.numpy as jnp
from jax.experimental import pallas as pl
from jax.experimental.pallas import tpu as pltpu


def _timenorm_kernel(*refs, eps: float, affine: bool):
    if affine:
        x_ref, w_ref, b_ref, o_ref = refs
    else:
        x_ref, o_ref = refs

    x = x_ref[...].astype(jnp.float32)                   # (TB, F, TT)
    f = x.shape[1]

    mean = jnp.mean(x, axis=1, keepdims=True)             # (TB, 1, TT)
    diff = x - mean

    # torch.std default is unbiased (ddof=1).  For f == 1 this yields nan/inf,
    # matching torch; documented, not guarded.
    inv_ddof = (1.0 / (f - 1)) if f > 1 else float("nan")
    var = jnp.sum(diff * diff, axis=1, keepdims=True) * jnp.float32(inv_ddof)
    std = jnp.sqrt(var)                                    # (TB, 1, TT)

    # Exact reciprocal: only (TB, 1, TT) wide, i.e. 1/F of the elementwise
    # work, so the approx-EUP saving is negligible and exactness is cheap.
    inv = 1.0 / (std + jnp.float32(eps))                   # (TB, 1, TT)

    out = diff * inv                                       # (TB, F, TT)
    if affine:
        # w / b are pre-cast f32 (1, F, 1); broadcast mul/add, no extra
        # full-block temporary beyond `out` itself.
        out = out * w_ref[...] + b_ref[...]

    o_ref[...] = out.astype(o_ref.dtype)


# Per-element VMEM footprint of one block:
#   2 double-buffered input copies + 2 double-buffered output copies at the
#   I/O itemsize, plus ~3 full-block f32 temporaries (x32, diff, out).
def _bytes_per_elem(itemsize):
    return 4 * itemsize + 3 * 4


_TARGET_BLOCK_BYTES = 12 << 20     # footprint target; vmem_limit is 32 MiB
_VMEM_LIMIT_BYTES = 32 << 20       # <= physical on all of v5e/v6e/v7x


def _pick_tiles(B, F, T, itemsize):
    """Pick (TILE_B, TILE_T) budgeted by the in-kernel f32 working set."""
    bpe = _bytes_per_elem(itemsize)
    per_col = max(F * bpe, 1)                      # bytes per (b, t) column

    if T < 128:
        tile_t = T                                 # full dim satisfies (8,128)
    else:
        t_cap = pl.cdiv(T, 128) * 128              # enough 128-lane blocks to cover T
        max_tt = max(128, ((_TARGET_BLOCK_BYTES // per_col) // 128) * 128)
        # Keep the contiguous last dim long (>= 512 lanes) for HBM efficiency,
        # even if that exceeds the soft target (vmem_limit gives headroom).
        tile_t = min(t_cap, max(max_tt, 512))
        if tile_t >= T:
            tile_t = T                             # whole T fits: full-dim block
        elif T % 128 == 0:
            # Prefer a divisor-clean tile (avoids a padded partial block).
            tt = tile_t
            while T % tt != 0 and tt > 128:
                tt -= 128
            if tt >= 512 or tt == tile_t:
                tile_t = tt

    # Coalesce batches (cdiv grid -- no divisor requirement) while the block
    # working set stays under the target.
    tile_b = max(1, _TARGET_BLOCK_BYTES // max(F * tile_t * bpe, 1))
    tile_b = min(tile_b, B)

    # v7x has 2 TensorCores: make sure the grid has >= 2 blocks when possible.
    def nblocks():
        return pl.cdiv(B, tile_b) * pl.cdiv(T, tile_t)

    if nblocks() < 2 and tile_b > 1:
        tile_b = max(1, (tile_b + 1) // 2)
    if nblocks() < 2 and T >= 256 and tile_t > 128:
        tile_t = max(128, ((tile_t // 2) // 128) * 128)

    return tile_b, tile_t


def time_norm(x, weight=None, bias=None, eps: float = 1e-5, affine: bool = True):
    """x: (B, F, T); weight/bias: (1, F, 1) (required iff affine). Returns (B, F, T)."""
    B, F, T = x.shape
    itemsize = jnp.dtype(x.dtype).itemsize
    tile_b, tile_t = _pick_tiles(B, F, T, itemsize)

    grid = (pl.cdiv(B, tile_b), pl.cdiv(T, tile_t))

    x_spec = pl.BlockSpec((tile_b, F, tile_t), lambda b, t: (b, 0, t))
    out_spec = pl.BlockSpec((tile_b, F, tile_t), lambda b, t: (b, 0, t))

    if affine:
        weight = jnp.asarray(weight, jnp.float32)          # pre-cast once, wrapper side
        bias = jnp.asarray(bias, jnp.float32)
        wb_spec = pl.BlockSpec((1, F, 1), lambda b, t: (0, 0, 0))
        in_specs = [x_spec, wb_spec, wb_spec]
        args = (x, weight, bias)
        param_bytes = 2 * F * 4
    else:
        in_specs = [x_spec]
        args = (x,)
        param_bytes = 0

    cost = pl.CostEstimate(
        flops=8 * B * F * T,
        transcendentals=2 * B * T,          # sqrt + reciprocal per (b, t) column
        bytes_accessed=2 * B * F * T * itemsize + param_bytes,
    )

    kernel = functools.partial(_timenorm_kernel, eps=eps, affine=affine)

    return pl.pallas_call(
        kernel,
        out_shape=jax.ShapeDtypeStruct((B, F, T), x.dtype),
        grid_spec=pltpu.PrefetchScalarGridSpec(
            num_scalar_prefetch=0,
            grid=grid,
            in_specs=in_specs,
            out_specs=out_spec,
        ),
        compiler_params=pltpu.CompilerParams(
            dimension_semantics=("parallel", "parallel"),
            vmem_limit_bytes=_VMEM_LIMIT_BYTES,
        ),
        cost_estimate=cost,
    )(*args)


def time_norm_ref(x, weight=None, bias=None, eps=1e-5, affine=True):
    x32 = x.astype(jnp.float32)
    mean = jnp.mean(x32, axis=1, keepdims=True)
    std = jnp.std(x32, axis=1, keepdims=True, ddof=1)
    out = (x32 - mean) / (std + eps)
    if affine:
        out = out * weight.astype(jnp.float32) + bias.astype(jnp.float32)
    return out.astype(x.dtype)


if __name__ == "__main__":
    key = jax.random.PRNGKey(0)
    k1, k2, k3, k4 = jax.random.split(key, 4)

    # --- Case 1: tiny shape, T < 128 -> full-T block path (f32).
    B, F, T = 2, 8, 16
    x = jax.random.normal(k1, (B, F, T), dtype=jnp.float32)
    weight = jnp.ones((1, F, 1), dtype=jnp.float32) * 1.5
    bias = jnp.full((1, F, 1), 0.25, dtype=jnp.float32)

    out = jax.block_until_ready(time_norm(x, weight, bias))
    ref = time_norm_ref(x, weight, bias)
    assert jnp.allclose(out, ref, atol=1e-4, rtol=1e-4), (
        f"case1 max err {jnp.max(jnp.abs(out - ref))}")

    # --- Case 2: T multiple of 128, bf16 I/O -> exercises the (B, T) grid and
    #             the halved-HBM-bytes path.
    B2, F2, T2 = 2, 8, 256
    x2 = jax.random.normal(k2, (B2, F2, T2), dtype=jnp.bfloat16)
    w2 = jnp.ones((1, F2, 1), dtype=jnp.float32) * 0.75
    b2 = jnp.full((1, F2, 1), -0.1, dtype=jnp.float32)

    out2 = jax.block_until_ready(time_norm(x2, w2, b2))
    ref2 = time_norm_ref(x2, w2, b2)
    assert jnp.allclose(out2.astype(jnp.float32), ref2.astype(jnp.float32),
                        atol=3e-2, rtol=3e-2), (
        f"case2 max err "
        f"{jnp.max(jnp.abs(out2.astype(jnp.float32) - ref2.astype(jnp.float32)))}")

    # --- Case 3: affine=False branch.
    x3 = jax.random.normal(k3, (B, F, T), dtype=jnp.float32)
    out3 = jax.block_until_ready(time_norm(x3, affine=False))
    ref3 = time_norm_ref(x3, affine=False)
    assert jnp.allclose(out3, ref3, atol=1e-4, rtol=1e-4), (
        f"case3 max err {jnp.max(jnp.abs(out3 - ref3))}")

    # --- Case 4: ragged batch grid (B=3 with tile_b=2) + T not a multiple of
    #             128 but whole-T fits -> full-dim T block, masked tail on B.
    B4, F4, T4 = 3, 8, 200
    x4 = jax.random.normal(k4, (B4, F4, T4), dtype=jnp.float32)
    w4 = jnp.full((1, F4, 1), 2.0, dtype=jnp.float32)
    b4 = jnp.full((1, F4, 1), 0.5, dtype=jnp.float32)
    out4 = jax.block_until_ready(time_norm(x4, w4, b4))
    ref4 = time_norm_ref(x4, w4, b4)
    assert jnp.allclose(out4, ref4, atol=1e-4, rtol=1e-4), (
        f"case4 max err {jnp.max(jnp.abs(out4 - ref4))}")

    print("KERNEL_OK")
</pallas_src>

<mosaic_0001>
module attributes {stable_mosaic.version = 11 : i64} {
  func.func @_timenorm_kernel(%arg0: i32, %arg1: i32, %arg2: memref<1x8x16xf32, #tpu.memory_space<vmem>>, %arg3: memref<1x8x1xf32, #tpu.memory_space<vmem>>, %arg4: memref<1x8x1xf32, #tpu.memory_space<vmem>>, %arg5: memref<1x8x16xf32, #tpu.memory_space<vmem>>) attributes {dimension_semantics = [#tpu.dimension_semantics<parallel>, #tpu.dimension_semantics<parallel>], iteration_bounds = array<i64: 2, 1>, scalar_prefetch = 0 : i64, scratch_operands = 0 : i64, tpu.core_type = #tpu.core_type<tc>, window_params = [{transform_indices = @transform_0, window_bounds = array<i64: 1, 8, 16>}, {pipeline_mode = #tpu.pipeline_mode<synchronous>, transform_indices = @transform_1, window_bounds = array<i64: 1, 8, 1>}, {pipeline_mode = #tpu.pipeline_mode<synchronous>, transform_indices = @transform_2, window_bounds = array<i64: 1, 8, 1>}, {transform_indices = @transform_3, window_bounds = array<i64: 1, 8, 16>}]} {
    %c0 = arith.constant 0 : index
    %c0_0 = arith.constant 0 : index
    %c0_1 = arith.constant 0 : index
    %0 = vector.load %arg2[%c0, %c0_0, %c0_1] : memref<1x8x16xf32, #tpu.memory_space<vmem>>, vector<1x8x16xf32>
    %cst = arith.constant dense<0.000000e+00> : vector<1x16xf32>
    %1 = vector.multi_reduction <add>, %0, %cst [1] : vector<1x8x16xf32> to vector<1x16xf32>
    %2 = vector.shape_cast %1 : vector<1x16xf32> to vector<1x1x16xf32>
    %cst_2 = arith.constant 8.000000e+00 : f32
    %3 = vector.broadcast %cst_2 : f32 to vector<1x1x16xf32>
    %4 = arith.divf %2, %3 : vector<1x1x16xf32>
    %5 = vector.broadcast %4 : vector<1x1x16xf32> to vector<1x8x16xf32>
    %6 = arith.subf %0, %5 : vector<1x8x16xf32>
    %7 = arith.mulf %6, %6 : vector<1x8x16xf32>
    %cst_3 = arith.constant dense<0.000000e+00> : vector<1x16xf32>
    %8 = vector.multi_reduction <add>, %7, %cst_3 [1] : vector<1x8x16xf32> to vector<1x16xf32>
    %9 = vector.shape_cast %8 : vector<1x16xf32> to vector<1x1x16xf32>
    %cst_4 = arith.constant 0.142857149 : f32
    %10 = vector.broadcast %cst_4 : f32 to vector<1x1x16xf32>
    %11 = arith.mulf %9, %10 : vector<1x1x16xf32>
    %12 = math.sqrt %11 : vector<1x1x16xf32>
    %cst_5 = arith.constant 9.99999974E-6 : f32
    %13 = vector.broadcast %cst_5 : f32 to vector<1x1x16xf32>
    %14 = arith.addf %12, %13 : vector<1x1x16xf32>
    %cst_6 = arith.constant 1.000000e+00 : f32
    %15 = vector.broadcast %cst_6 : f32 to vector<1x1x16xf32>
    %16 = arith.divf %15, %14 : vector<1x1x16xf32>
    %17 = vector.broadcast %16 : vector<1x1x16xf32> to vector<1x8x16xf32>
    %18 = arith.mulf %6, %17 : vector<1x8x16xf32>
    %c0_7 = arith.constant 0 : index
    %c0_8 = arith.constant 0 : index
    %c0_9 = arith.constant 0 : index
    %19 = vector.load %arg3[%c0_7, %c0_8, %c0_9] : memref<1x8x1xf32, #tpu.memory_space<vmem>>, vector<1x8x1xf32>
    %20 = vector.broadcast %19 : vector<1x8x1xf32> to vector<1x8x16xf32>
    %21 = arith.mulf %18, %20 : vector<1x8x16xf32>
    %c0_10 = arith.constant 0 : index
    %c0_11 = arith.constant 0 : index
    %c0_12 = arith.constant 0 : index
    %22 = vector.load %arg4[%c0_10, %c0_11, %c0_12] : memref<1x8x1xf32, #tpu.memory_space<vmem>>, vector<1x8x1xf32>
    %23 = vector.broadcast %22 : vector<1x8x1xf32> to vector<1x8x16xf32>
    %24 = arith.addf %21, %23 : vector<1x8x16xf32>
    %c0_13 = arith.constant 0 : index
    %c0_14 = arith.constant 0 : index
    %c0_15 = arith.constant 0 : index
    %25 = vector.load %arg5[%c0_13, %c0_14, %c0_15] : memref<1x8x16xf32, #tpu.memory_space<vmem>>, vector<1x8x16xf32>
    tpu.vector_store %arg5[%c0_13, %c0_14, %c0_15], %24 {strides = array<i32>} : memref<1x8x16xf32, #tpu.memory_space<vmem>>, vector<1x8x16xf32>,
    return
  }
  func.func @transform_0(%arg0: i32, %arg1: i32) -> (i32, i32, i32) {
    %c0_i32 = arith.constant 0 : i32
    %c0_i32_0 = arith.constant 0 : i32
    return %arg0, %c0_i32, %arg1 : i32, i32, i32
  }
  func.func @transform_1(%arg0: i32, %arg1: i32) -> (i32, i32, i32) {
    %c0_i32 = arith.constant 0 : i32
    %c0_i32_0 = arith.constant 0 : i32
    %c0_i32_1 = arith.constant 0 : i32
    %c0_i32_2 = arith.constant 0 : i32
    return %c0_i32, %c0_i32_0, %c0_i32_1 : i32, i32, i32
  }
  func.func @transform_2(%arg0: i32, %arg1: i32) -> (i32, i32, i32) {
    %c0_i32 = arith.constant 0 : i32
    %c0_i32_0 = arith.constant 0 : i32
    %c0_i32_1 = arith.constant 0 : i32
    %c0_i32_2 = arith.constant 0 : i32
    return %c0_i32, %c0_i32_0, %c0_i32_1 : i32, i32, i32
  }
  func.func @transform_3(%arg0: i32, %arg1: i32) -> (i32, i32, i32) {
    %c0_i32 = arith.constant 0 : i32
    %c0_i32_0 = arith.constant 0 : i32
    return %arg0, %c0_i32, %arg1 : i32, i32, i32
  }
}

</mosaic_0001>

<llo_original>
// kernel: tpu_custom_call.1
$region0: #{tpu_custom_call.1}
  #allocation0 [shape = 'u32[]', space=smem, size = 0x4, offset = 0x4, fixed_abs, tag = 'smem constant byte address 0x4 - core index']
  #allocation1 [shape = 'u32[144,128]{1,0:T(1,128)}', space=vmem, size = 0x12000, scoped, tag = 'internal scratch']
  %s0 = inlined_call_operand.vmem [shape: f32[2,8,16], index: 0, kind: input, shape index: {}]
  %s1 = inlined_call_operand.vmem [shape: f32[1,8,1], index: 1, kind: input, shape index: {}]
  %s2 = inlined_call_operand.vmem [shape: f32[1,8,1], index: 2, kind: input, shape index: {}]
  %s3 = inlined_call_operand.hbm [shape: f32[2,8,16], index: 3, kind: output, shape index: {}]
  %s4 = sld [smem:[#allocation0]]
  $region45: #{tpu_custom_call.1} parent=0
    _
  %s6 = ssub.s32 1, %s4
  %s7 = scalar_select 0, %s6, %s4
  $region1: #{tpu_custom_call.1} parent=0
    #allocation2 [shape = 'u8[8192]{0}', space=vmem, size = 0x2000, scoped, tag = 'output window, operand 0']
    #allocation3 [shape = 's32[2]{0}', space=sflag, size = 0x8, scoped, tag = 'scoped memory for tpu_custom_call.1']
    %8 = vsyncpa [#allocation3], 0
    %s9 = scalar_lea.sflag [#allocation3], 1
    %10 = vsyncpa %s9, 0
    loop: start=0, step=1, limit=4
    $region2: #{tpu_custom_call.1} parent=1 // loop_pre_header
      _
    $region3: #{tpu_custom_call.1} parent=1 // loop_header
      %s12 = sphi 0, %s16
      %p13 = scmp.ge.s32.totalorder %s12, 4
      %s19 = sphi 0, %s31
      %s20 = sphi 0, %s27
      %s21 = sphi 0, %s19
      %s22 = sphi 0, %s20
      %s23 = sphi 0, %s21
      %s24 = sphi 0, %s22
      %s36 = sphi 0, %s38
      %s39 = sphi 0, %s36
      %s40 = sphi 0, %s39
      %s56 = sphi 0, %s40
      %s60 = sphi 0, %s60
      %s62 = sphi 0, %s60
      %s63 = sphi 0, %s62
      %s77 = sphi 0, %s63
      %s81 = sphi 0, %s81
      %s83 = sphi 0, %s81
      %s84 = sphi 0, %s83
      %s98 = sphi 0, %s84
      %s106 = sphi 0, %s108
      %s109 = sphi 0, %s106
      %s110 = sphi 0, %s109
      %s126 = sphi 0, %s110
    $region4: #{tpu_custom_call.1} parent=1 // loop_header_branch
      %15 = sbr.rel (%p13) target = $region8
    $region5: #{tpu_custom_call.1} parent=1 // loop_body
      %s17 = ssub.s32 %s12, 1
      %s18 = ssub.s32 %s12, 2
      %s25 = sadd.s32 1, %s20
      %p26 = scmp.ge.s32.totalorder %s25, 1
      %s27 = scalar_select %p26, 0, %s25
      %s28 = sadd.s32 1, %s19
      %s29 = scalar_select %p26, %s28, %s19
      %p30 = scmp.ge.s32.totalorder %s29, 2
      %s31 = scalar_select %p30, 0, %s29
      %s32 = ssub.s32 %s19, %s31
      %s33 = ssub.s32 %s20, %s27
      %s34 = sor.u32 %s32, %s33
      %p35 = scmp.eq.s32.totalorder %s34, 0
      %s37 = sadd.s32 %s36, 1
      %s38 = scalar_select %p35, %s36, %s37
      %p41 = pneg %p35
      %p42 = scmp.eq.s32.totalorder %s12, 1
      %p43 = por %p41, %p42
      %p44 = scmp.ne.s32.totalorder %s36, %s39
      %p45 = scmp.eq.s32.totalorder %s12, 0
      %p46 = por %p44, %p45
      %p47 = scmp.ne.s32.totalorder %s36, %s39
      %p48 = scmp.eq.s32.totalorder %s17, 1
      %p49 = por %p47, %p48
      %p50 = scmp.ne.s32.totalorder %s39, %s40
      %p51 = scmp.eq.s32.totalorder %s17, 0
      %p52 = por %p50, %p51
      %p53 = scmp.ne.s32.totalorder %s39, %s40
      %p54 = scmp.eq.s32.totalorder %s18, 1
      %p55 = por %p53, %p54
      %p57 = scmp.ne.s32.totalorder %s40, %s56
      %p58 = scmp.eq.s32.totalorder %s18, 0
      %p59 = por %p57, %p58
      %s61 = sadd.s32 %s60, 1
      %p64 = scmp.eq.s32.totalorder %s12, 1
      %p65 = scmp.ne.s32.totalorder %s60, %s62
      %p66 = scmp.eq.s32.totalorder %s12, 0
      %p67 = por %p65, %p66
      %p68 = scmp.ne.s32.totalorder %s60, %s62
      %p69 = scmp.eq.s32.totalorder %s17, 1
      %p70 = por %p68, %p69
      %p71 = scmp.ne.s32.totalorder %s62, %s63
      %p72 = scmp.eq.s32.totalorder %s17, 0
      %p73 = por %p71, %p72
      %p74 = scmp.ne.s32.totalorder %s62, %s63
      %p75 = scmp.eq.s32.totalorder %s18, 1
      %p76 = por %p74, %p75
      %p78 = scmp.ne.s32.totalorder %s63, %s77
      %p79 = scmp.eq.s32.totalorder %s18, 0
      %p80 = por %p78, %p79
      %s82 = sadd.s32 %s81, 1
      %p85 = scmp.eq.s32.totalorder %s12, 1
      %p86 = scmp.ne.s32.totalorder %s81, %s83
      %p87 = scmp.eq.s32.totalorder %s12, 0
      %p88 = por %p86, %p87
      %p89 = scmp.ne.s32.totalorder %s81, %s83
      %p90 = scmp.eq.s32.totalorder %s17, 1
      %p91 = por %p89, %p90
      %p92 = scmp.ne.s32.totalorder %s83, %s84
      %p93 = scmp.eq.s32.totalorder %s17, 0
      %p94 = por %p92, %p93
      %p95 = scmp.ne.s32.totalorder %s83, %s84
      %p96 = scmp.eq.s32.totalorder %s18, 1
      %p97 = por %p95, %p96
      %p99 = scmp.ne.s32.totalorder %s84, %s98
      %p100 = scmp.eq.s32.totalorder %s18, 0
      %p101 = por %p99, %p100
      %s102 = ssub.s32 %s19, %s31
      %s103 = ssub.s32 %s20, %s27
      %s104 = sor.u32 %s102, %s103
      %p105 = scmp.eq.s32.totalorder %s104, 0
      %s107 = sadd.s32 %s106, 1
      %s108 = scalar_select %p105, %s106, %s107
      %p111 = pneg %p105
      %p112 = scmp.eq.s32.totalorder %s12, 1
      %p113 = por %p111, %p112
      %p114 = scmp.ne.s32.totalorder %s106, %s109
      %p115 = scmp.eq.s32.totalorder %s12, 0
      %p116 = por %p114, %p115
      %p117 = scmp.ne.s32.totalorder %s106, %s109
      %p118 = scmp.eq.s32.totalorder %s17, 1
      %p119 = por %p117, %p118
      %p120 = scmp.ne.s32.totalorder %s109, %s110
      %p121 = scmp.eq.s32.totalorder %s17, 0
      %p122 = por %p120, %p121
      %p123 = scmp.ne.s32.totalorder %s109, %s110
      %p124 = scmp.eq.s32.totalorder %s18, 1
      %p125 = por %p123, %p124
      %p127 = scmp.ne.s32.totalorder %s110, %s126
      %p128 = scmp.eq.s32.totalorder %s18, 0
      %p129 = por %p127, %p128
      %p130 = scmp.le.s32.totalorder 1, %s12
      %p131 = scmp.lt.s32.totalorder %s12, 3
      %p132 = pnand %p130, %p131
      %p133 = pneg %p132
      // Predicated region
      $region9: #{tpu_custom_call.1} parent=5 // pred_check
        _
      $region10: #{tpu_custom_call.1} parent=5 // pred_check_branch
        %135 = sbr.rel (%p132) target = $region12
      $region11: #{tpu_custom_call.1} parent=5 // pred_region
        %s136 = ssub.s32 %s12, 1
        // Predicated region
        $region13: #{tpu_custom_call.1} parent=11 // pred_check
          %p137 = pneg %p73
        $region14: #{tpu_custom_call.1} parent=11 // pred_check_branch
          %139 = sbr.rel (%p137) target = $region16
        $region15: #{tpu_custom_call.1} parent=11 // pred_region
          _
        $region16: #{tpu_custom_call.1} parent=11 // pred_fallthru
          _
        // Predicated region
        $region17: #{tpu_custom_call.1} parent=11 // pred_check
          %p140 = pneg %p94
        $region18: #{tpu_custom_call.1} parent=11 // pred_check_branch
          %142 = sbr.rel (%p140) target = $region20
        $region19: #{tpu_custom_call.1} parent=11 // pred_region
          _
        $region20: #{tpu_custom_call.1} parent=11 // pred_fallthru
          _
      $region12: #{tpu_custom_call.1} parent=5 // pred_fallthru
        _
      %p143 = scmp.lt.s32.totalorder %s12, 2
      // Predicated region
      $region21: #{tpu_custom_call.1} parent=5 // pred_check
        %p144 = pneg %p143
      $region22: #{tpu_custom_call.1} parent=5 // pred_check_branch
        %146 = sbr.rel (%p144) target = $region24
      $region23: #{tpu_custom_call.1} parent=5 // pred_region
        // Predicated region
        $region25: #{tpu_custom_call.1} parent=23 // pred_check
          %p147 = pneg %p46
        $region26: #{tpu_custom_call.1} parent=23 // pred_check_branch
          %149 = sbr.rel (%p147) target = $region28
        $region27: #{tpu_custom_call.1} parent=23 // pred_region
          %p150 = scmp.lt.s32.totalorder %s19, 1
          %s151 = scalar_select %p150, %s19, 1
          %p152 = scmp.lt.s32.totalorder %s20, 0
          %s153 = scalar_select %p152, %s20, 0
          %s154 = sadd.s32 %s153, %s151
          %s155 = smul.addr %s154, 8
          %s156 = scalar_lea.vmem %s0, %s155
        $region28: #{tpu_custom_call.1} parent=23 // pred_fallthru
          _
      $region24: #{tpu_custom_call.1} parent=5 // pred_fallthru
        _
      %p157 = scmp.le.s32.totalorder 1, %s12
      %p158 = scmp.lt.s32.totalorder %s12, 3
      %p159 = pnand %p157, %p158
      %p160 = pneg %p159
      // Predicated region
      $region29: #{tpu_custom_call.1} parent=5 // pred_check
        _
      $region30: #{tpu_custom_call.1} parent=5 // pred_check_branch
        %162 = sbr.rel (%p159) target = $region32
      $region31: #{tpu_custom_call.1} parent=5 // pred_region
        %s163 = ssub.s32 %s12, 1
        %p164 = scmp.lt.s32.totalorder %s21, 1
        %s165 = scalar_select %p164, %s21, 1
        %p166 = scmp.lt.s32.totalorder %s22, 0
        %s167 = scalar_select %p166, %s22, 0
        %s168 = sadd.s32 %s167, %s165
        %s169 = smul.addr %s168, 8
        %s170 = scalar_lea.vmem %s0, %s169
        %p171 = pneg %p52
        %p172 = pneg %p49
        %p173 = pneg %p73
        %p174 = pneg %p70
        %p175 = pneg %p94
        %p176 = pneg %p91
        %p177 = pneg %p122
        %p178 = pneg %p119
        %s179 = sand.u32 %s109, 1
        %s180 = scalar_lea.sflag [#allocation3], %s179
        %s181 = sand.u32 %s109, 1
        %s182 = smul.addr %s181, 8
        %s183 = scalar_lea.vmem [#allocation2], %s182
        %p184 = scmp.lt.s32.totalorder %s21, 1
        %s185 = scalar_select %p184, %s21, 1
        %p186 = scmp.lt.s32.totalorder %s22, 0
        %s187 = scalar_select %p186, %s22, 0
        %s188 = sadd.s32 %s187, %s185
        %s189 = smul.addr %s188, 8
        %s190 = scalar_lea.vmem %s0, %s189
        %v191 = vld [vmem:[%s190] sm:$0xff]
        %vm192 = vcmask 130048
        %v193 = vsel %vm192, %v191, 0.0
        %v194 = vrot.slane %v193, 4
        %v195 = vadd.f32 %v193, %v194
        %v196 = vrot.slane %v195, 2
        %v197 = vadd.f32 %v195, %v196
        %v198 = vrot.slane %v197, 1
        %v199 = vadd.f32 %v197, %v198
        %v200 = vrcp.pop 8.0
        %v201 = vmul.f32 %v199, %v200
        %v202 = vsub.f32 %v191, %v201
        %v203 = vmul.f32 %v202, %v202
        %v204 = vsel %vm192, %v203, 0.0
        %v205 = vrot.slane %v204, 4
        %v206 = vadd.f32 %v204, %v205
        %v207 = vrot.slane %v206, 2
        %v208 = vadd.f32 %v206, %v207
        %v209 = vrot.slane %v208, 1
        %v210 = vadd.f32 %v208, %v209
        %v211 = vmul.f32 %v210, 0.14285715
        %v212 = vrsqrt.pop %v211
        %v213 = vmul.f32 %v211, %v212
        %vm214 = vcmp.eq.f32.partialorder %v211, inf
        %v215 = vsel %vm214, %v211, %v213
        %vm216 = vcmp.eq.f32.partialorder %v211, 0.0
        %v217 = vand.u32 %v211, 2147483648
        %v218 = vsel %vm216, %v217, %v215
        %v219 = vadd.f32 %v218, 1e-05
        %v220 = vrcp.pop %v219
        %v221 = vmul.f32 1.0, %v220
        %v222 = vmul.f32 %v202, %v221
        %v223 = vld [vmem:[%s1] sm:$0xff]
        %225 = vset.pattern.permute.xlu0 0
        %226 = vperm.xlu0 %225, %v223
        %v227 = vpop.permute.xlu0 %226
        %v229 = vmul.f32 %v222, %v227
        %v230 = vld [vmem:[%s2] sm:$0xff]
        %232 = vset.pattern.permute.xlu0 0
        %233 = vperm.xlu0 %232, %v230
        %v234 = vpop.permute.xlu0 %233
        %v236 = vadd.f32 %v229, %v234
        %237 = vst.msk [vmem:[%s183] sm:$0xff] %vm192, %v236
        %s238 = sand.u32 %s109, 1
        %s239 = scalar_lea.sflag [#allocation3], %s238
        %s240 = sand.u32 %s109, 1
        %s241 = smul.addr %s240, 8
        %s242 = scalar_lea.vmem [#allocation2], %s241
        // Predicated region
        $region33: #{tpu_custom_call.1} parent=31 // pred_check
          %p243 = pneg %p119
        $region34: #{tpu_custom_call.1} parent=31 // pred_check_branch
          %245 = sbr.rel (%p243) target = $region36
        $region35: #{tpu_custom_call.1} parent=31 // pred_region
          %s247 = ssub.s32 128, 128
          %248 = vsyncadd %s239, %s247
          %s249 = sadd.s32 %s22, %s21
          %s250 = smul.addr %s249, 128
          %s251 = scalar_lea.hbm %s3, %s250
          %s253 = sshll.u32 %s242, 4
          %s254 = int_to_ptr.vmem [resolvable:$true] %s253
          %256 = dma.vmem_to_hbm [thread:$0]  %s254, 128, %s251, %s239
        $region36: #{tpu_custom_call.1} parent=31 // pred_fallthru
          _
      $region32: #{tpu_custom_call.1} parent=5 // pred_fallthru
        _
      %p257 = scmp.le.s32.totalorder 2, %s12
      // Predicated region
      $region37: #{tpu_custom_call.1} parent=5 // pred_check
        %p258 = pneg %p257
      $region38: #{tpu_custom_call.1} parent=5 // pred_check_branch
        %260 = sbr.rel (%p258) target = $region40
      $region39: #{tpu_custom_call.1} parent=5 // pred_region
        %s261 = ssub.s32 %s12, 2
        // Predicated region
        $region41: #{tpu_custom_call.1} parent=39 // pred_check
          %p262 = pneg %p125
        $region42: #{tpu_custom_call.1} parent=39 // pred_check_branch
          %264 = sbr.rel (%p262) target = $region44
        $region43: #{tpu_custom_call.1} parent=39 // pred_region
          %s265 = sand.u32 %s110, 1
          %s266 = scalar_lea.sflag [#allocation3], %s265
          %s267 = sand.u32 %s110, 1
          %s268 = smul.addr %s267, 8
          %s269 = scalar_lea.vmem [#allocation2], %s268
          %270 = dma.done %s266, 128
        $region44: #{tpu_custom_call.1} parent=39 // pred_fallthru
          _
      $region40: #{tpu_custom_call.1} parent=5 // pred_fallthru
        _
    $region6: #{tpu_custom_call.1} parent=1 // loop_footer
      %s16 = sadd.s32 1, %s12
    $region7: #{tpu_custom_call.1} parent=1 // loop_footer_branch
      %11 = sbr.rel target = $region3
    $region8: #{tpu_custom_call.1} parent=1 // loop_exit
      _
    %271 = vsyncpa [#allocation3], 1
    %s272 = scalar_lea.sflag [#allocation3], 1
    %273 = vsyncpa %s272, 1

</llo_original>
